<compile_context>
chip_gen: v7x
topology: tpu7x:2x2x1
jax: 0.10.0
libtpu: 0.0.40
codegen_flags: <defaults>
</compile_context>

<pallas_src>
import math
import functools

import jax
import jax.numpy as jnp
from jax.experimental import pallas as pl
from jax.experimental.pallas import tpu as pltpu


# ----------------------------------------------------------------------------
# Kernel: one (class-tile, batch-tile) grid step.
# ----------------------------------------------------------------------------
def magface_kernel(feats_ref, weight_ref, labels_ref,        # inputs
                   cosm_ref, sinm_ref, mincos_ref,           # per-row consts
                   out_ref,                                   # output
                   *, margin_am, scale, block_c):
    j = pl.program_id(0)  # class-tile index (outer grid axis)

    # MXU: bf16 x bf16 -> f32.  feats were pre-normalized and pre-scaled by
    # `scale`, weight columns pre-normalized, so the matmul already yields
    # scale * cos_theta.
    dots = jnp.dot(feats_ref[...], weight_ref[...],
                   preferred_element_type=jnp.float32)            # [TB, TC]
    cos_s = jnp.clip(dots, -scale, scale)                         # scale*clip(cos)

    # One-hot mask for this class tile (global class = local + j*block_c).
    col_idx = jax.lax.broadcasted_iota(jnp.int32, cos_s.shape, 1) + j * block_c
    index = col_idx == labels_ref[...]                            # [TB, TC]

    # Angular-margin math only on the label column ([TB, 1]).
    cos_label = jnp.sum(jnp.where(index, cos_s, 0.0), axis=1,
                        keepdims=True) * (1.0 / scale)            # [TB, 1]
    sin_label = jnp.sqrt(jnp.maximum(1.0 - cos_label * cos_label, 0.0))
    cos_label_m = cos_label * cosm_ref[...] - sin_label * sinm_ref[...]
    cos_label_m = jnp.where(cos_label > mincos_ref[...],
                            cos_label_m, cos_label - margin_am)   # [TB, 1]

    out_ref[...] = jnp.where(index, cos_label_m * scale, cos_s)


def _round_up(x, m):
    return ((x + m - 1) // m) * m


# ----------------------------------------------------------------------------
# Wrapper: per-row / per-column constants in XLA, padded lane-aligned tiles,
# class-tile-outer grid so the weight tile is streamed from HBM exactly once.
# ----------------------------------------------------------------------------
def magface_forward(feats, weight, labels, *,
                    margin_am=0.0, scale=32.0, l_a=10.0, u_a=110.0,
                    l_margin=0.45, u_margin=0.8, lamda=20.0,
                    block_b=None, block_c=None):
    B, D = feats.shape
    D2, C = weight.shape
    assert D == D2

    feats_f = feats.astype(jnp.float32)
    weight_f = weight.astype(jnp.float32)

    # ---- per-row quantities (exact f32, done once by XLA) -------------------
    row_sq = jnp.sum(feats_f * feats_f, axis=1, keepdims=True)
    row_norm = jnp.sqrt(row_sq)                                    # [B, 1]
    x_norm = jnp.clip(row_norm, l_a, u_a)
    ada_margin = (u_margin - l_margin) / (u_a - l_a) * (x_norm - l_a) + l_margin
    cos_m = jnp.cos(ada_margin)
    sin_m = jnp.sin(ada_margin)
    min_cos = jnp.cos(math.pi - ada_margin)
    loss_g = (1.0 / (u_a * u_a)) * x_norm + 1.0 / x_norm           # exact

    # ---- normalized, pre-scaled bf16 MXU operands ---------------------------
    feats_bf = (feats_f * (scale / jnp.maximum(row_norm, 1e-12))
                ).astype(jnp.bfloat16)                             # [B, D]
    col_norm = jnp.sqrt(jnp.sum(weight_f * weight_f, axis=0, keepdims=True))
    weight_bf = (weight_f / jnp.maximum(col_norm, 1e-12)
                 ).astype(jnp.bfloat16)                            # [D, C]

    # ---- tile sizes & padding (lane/sublane aligned, never un-tiled C) ------
    if block_b is None:
        block_b = min(256, _round_up(B, 8))
    if block_c is None:
        block_c = min(1024, _round_up(C, 128))
    Bp = _round_up(B, block_b)
    Cp = _round_up(C, block_c)
    pad_b, pad_c = Bp - B, Cp - C

    feats_bf = jnp.pad(feats_bf, ((0, pad_b), (0, 0)))
    weight_bf = jnp.pad(weight_bf, ((0, 0), (0, pad_c)))
    labels_col = jnp.pad(labels.astype(jnp.int32).reshape(B, 1),
                         ((0, pad_b), (0, 0)))
    cos_m_p = jnp.pad(cos_m, ((0, pad_b), (0, 0)))
    sin_m_p = jnp.pad(sin_m, ((0, pad_b), (0, 0)))
    min_cos_p = jnp.pad(min_cos, ((0, pad_b), (0, 0)))

    kernel = functools.partial(
        magface_kernel,
        margin_am=float(margin_am), scale=float(scale), block_c=int(block_c),
    )

    # Grid: class tiles OUTER, batch tiles INNER.  The weight index_map only
    # depends on the outer axis, so each weight tile is fetched once and stays
    # resident across the whole batch.  No carried state -> both axes parallel.
    grid_spec = pltpu.PrefetchScalarGridSpec(
        num_scalar_prefetch=0,
        grid=(Cp // block_c, Bp // block_b),
        in_specs=[
            pl.BlockSpec((block_b, D), lambda j, i: (i, 0)),        # feats (bf16)
            pl.BlockSpec((D, block_c), lambda j, i: (0, j)),        # weight (bf16)
            pl.BlockSpec((block_b, 1), lambda j, i: (i, 0)),        # labels
            pl.BlockSpec((block_b, 1), lambda j, i: (i, 0)),        # cos_m
            pl.BlockSpec((block_b, 1), lambda j, i: (i, 0)),        # sin_m
            pl.BlockSpec((block_b, 1), lambda j, i: (i, 0)),        # min_cos
        ],
        out_specs=pl.BlockSpec((block_b, block_c), lambda j, i: (i, j)),
    )

    logits_p = pl.pallas_call(
        kernel,
        grid_spec=grid_spec,
        out_shape=jax.ShapeDtypeStruct((Bp, Cp), jnp.float32),
        compiler_params=pltpu.CompilerParams(
            dimension_semantics=("parallel", "parallel"),
            vmem_limit_bytes=32 * 1024 * 1024,
        ),
    )(feats_bf, weight_bf, labels_col, cos_m_p, sin_m_p, min_cos_p)

    logits = logits_p[:B, :C]
    return logits, lamda * loss_g


# ----------------------------------------------------------------------------
# Helpers / reference
# ----------------------------------------------------------------------------
def init_magface_weight(key, feat_dim, num_class):
    # Mimics: torch.Tensor(feat_dim, num_class).uniform_(-1,1)
    #               .renorm_(2, 1, 1e-05).mul_(100000.0)
    w = jax.random.uniform(key, (feat_dim, num_class),
                           minval=-1.0, maxval=1.0, dtype=jnp.float32)
    col_norm = jnp.sqrt(jnp.sum(w * w, axis=0, keepdims=True))
    scale = jnp.where(col_norm > 1e-5, 1e-5 / col_norm, 1.0)
    return w * scale * 1e5


def magface_reference(feats, weight, labels, *,
                      margin_am=0.0, scale=32.0, l_a=10.0, u_a=110.0,
                      l_margin=0.45, u_margin=0.8, lamda=20.0):
    """Pure-JAX f32 transcription of the PyTorch forward."""
    feats = feats.astype(jnp.float32)
    weight = weight.astype(jnp.float32)
    row_norm = jnp.linalg.norm(feats, axis=1, keepdims=True)
    x_norm = jnp.clip(row_norm, l_a, u_a)
    ada_margin = (u_margin - l_margin) / (u_a - l_a) * (x_norm - l_a) + l_margin
    cos_m, sin_m = jnp.cos(ada_margin), jnp.sin(ada_margin)
    loss_g = 1.0 / (u_a ** 2) * x_norm + 1.0 / x_norm
    w_n = weight / jnp.maximum(jnp.linalg.norm(weight, axis=0, keepdims=True), 1e-12)
    f_n = feats / jnp.maximum(row_norm, 1e-12)
    cos_theta = jnp.clip(f_n @ w_n, -1.0, 1.0)
    sin_theta = jnp.sqrt(jnp.maximum(1.0 - cos_theta ** 2, 0.0))
    cos_theta_m = cos_theta * cos_m - sin_theta * sin_m
    min_cos = jnp.cos(math.pi - ada_margin)
    cos_theta_m = jnp.where(cos_theta > min_cos, cos_theta_m,
                            cos_theta - margin_am)
    one_hot = labels[:, None] == jnp.arange(weight.shape[1])[None, :]
    out = jnp.where(one_hot, cos_theta_m, cos_theta) * scale
    return out, lamda * loss_g


if __name__ == "__main__":
    B, D, C = 8, 32, 512  # small demo shapes; block_c=128 exercises C tiling

    key = jax.random.PRNGKey(0)
    k_feat, k_w, k_lab = jax.random.split(key, 3)

    feats = jax.random.normal(k_feat, (B, D), dtype=jnp.float32) * 15.0
    weight = init_magface_weight(k_w, D, C)
    labels = jax.random.randint(k_lab, (B,), 0, C, dtype=jnp.int32)

    logits, loss_g = magface_forward(feats, weight, labels,
                                     block_b=8, block_c=128)
    jax.block_until_ready((logits, loss_g))

    assert logits.shape == (B, C) and loss_g.shape == (B, 1)

    # Correctness vs pure-JAX f32 reference.  The MXU operands are bf16
    # (normalized feats/weights), so allow ~1e-2-level cosine error after the
    # *32 scale; loss_g is computed exactly in f32.
    ref_logits, ref_loss = magface_reference(feats, weight, labels)
    err_l = float(jnp.max(jnp.abs(logits - ref_logits)))
    err_g = float(jnp.max(jnp.abs(loss_g - ref_loss)))
    assert err_l < 0.5, f"logits mismatch vs reference: max abs err {err_l}"
    assert err_g < 1e-3, f"loss_g mismatch vs reference: max abs err {err_g}"

    print("KERNEL_OK")
</pallas_src>

<mosaic_0001>
module attributes {stable_mosaic.version = 11 : i64} {
  func.func @magface_kernel(%arg0: i32, %arg1: i32, %arg2: memref<8x32xbf16, #tpu.memory_space<vmem>>, %arg3: memref<32x128xbf16, #tpu.memory_space<vmem>>, %arg4: memref<8x1xi32, #tpu.memory_space<vmem>>, %arg5: memref<8x1xf32, #tpu.memory_space<vmem>>, %arg6: memref<8x1xf32, #tpu.memory_space<vmem>>, %arg7: memref<8x1xf32, #tpu.memory_space<vmem>>, %arg8: memref<8x128xf32, #tpu.memory_space<vmem>>) attributes {dimension_semantics = [#tpu.dimension_semantics<parallel>, #tpu.dimension_semantics<parallel>], iteration_bounds = array<i64: 4, 1>, scalar_prefetch = 0 : i64, scratch_operands = 0 : i64, tpu.core_type = #tpu.core_type<tc>, window_params = [{transform_indices = @transform_0, window_bounds = array<i64: 8, 32>}, {transform_indices = @transform_1, window_bounds = array<i64: 32, 128>}, {transform_indices = @transform_2, window_bounds = array<i64: 8, 1>}, {transform_indices = @transform_3, window_bounds = array<i64: 8, 1>}, {transform_indices = @transform_4, window_bounds = array<i64: 8, 1>}, {transform_indices = @transform_5, window_bounds = array<i64: 8, 1>}, {transform_indices = @transform_6, window_bounds = array<i64: 8, 128>}]} {
    %c0 = arith.constant 0 : index
    %c0_0 = arith.constant 0 : index
    %0 = vector.load %arg2[%c0, %c0_0] : memref<8x32xbf16, #tpu.memory_space<vmem>>, vector<8x32xbf16>
    %c0_1 = arith.constant 0 : index
    %c0_2 = arith.constant 0 : index
    %1 = vector.load %arg3[%c0_1, %c0_2] : memref<32x128xbf16, #tpu.memory_space<vmem>>, vector<32x128xbf16>
    %cst = arith.constant dense<0.000000e+00> : vector<8x128xf32>
    %2 = tpu.matmul %0, %1, %cst {dimension_numbers = #tpu.dot_dimension_numbers<[1], [0], [0], [1], [0, 0, 1, 1], [], []>} : vector<8x32xbf16>, vector<32x128xbf16>, vector<8x128xf32> -> vector<8x128xf32>
    %cst_3 = arith.constant -3.200000e+01 : f32
    %cst_4 = arith.constant 3.200000e+01 : f32
    %3 = vector.broadcast %cst_3 : f32 to vector<8x128xf32>
    %4 = arith.maximumf %3, %2 : vector<8x128xf32>
    %5 = vector.broadcast %cst_4 : f32 to vector<8x128xf32>
    %6 = arith.minimumf %5, %4 : vector<8x128xf32>
    %7 = tpu.iota {dimensions = array<i32: 1>} : vector<8x128xi32>
    %c128_i32 = arith.constant 128 : i32
    %8 = arith.muli %arg0, %c128_i32 : i32
    %9 = vector.broadcast %8 : i32 to vector<8x128xi32>
    %10 = arith.addi %7, %9 : vector<8x128xi32>
    %c0_5 = arith.constant 0 : index
    %c0_6 = arith.constant 0 : index
    %11 = vector.load %arg4[%c0_5, %c0_6] : memref<8x1xi32, #tpu.memory_space<vmem>>, vector<8x1xi32>
    %12 = vector.broadcast %11 : vector<8x1xi32> to vector<8x128xi32>
    %13 = arith.cmpi eq, %10, %12 : vector<8x128xi32>
    %cst_7 = arith.constant 0.000000e+00 : f32
    %14 = vector.broadcast %cst_7 : f32 to vector<8x128xf32>
    %15 = arith.select %13, %6, %14 : vector<8x128xi1>, vector<8x128xf32>
    %cst_8 = arith.constant dense<0.000000e+00> : vector<8xf32>
    %16 = vector.multi_reduction <add>, %15, %cst_8 [1] : vector<8x128xf32> to vector<8xf32>
    %17 = vector.shape_cast %16 : vector<8xf32> to vector<8x1xf32>
    %cst_9 = arith.constant 3.125000e-02 : f32
    %18 = vector.broadcast %cst_9 : f32 to vector<8x1xf32>
    %19 = arith.mulf %17, %18 : vector<8x1xf32>
    %20 = arith.mulf %19, %19 : vector<8x1xf32>
    %cst_10 = arith.constant 1.000000e+00 : f32
    %21 = vector.broadcast %cst_10 : f32 to vector<8x1xf32>
    %22 = arith.subf %21, %20 : vector<8x1xf32>
    %cst_11 = arith.constant 0.000000e+00 : f32
    %23 = vector.broadcast %cst_11 : f32 to vector<8x1xf32>
    %24 = arith.maximumf %22, %23 : vector<8x1xf32>
    %25 = math.sqrt %24 : vector<8x1xf32>
    %c0_12 = arith.constant 0 : index
    %c0_13 = arith.constant 0 : index
    %26 = vector.load %arg5[%c0_12, %c0_13] : memref<8x1xf32, #tpu.memory_space<vmem>>, vector<8x1xf32>
    %27 = arith.mulf %19, %26 : vector<8x1xf32>
    %c0_14 = arith.constant 0 : index
    %c0_15 = arith.constant 0 : index
    %28 = vector.load %arg6[%c0_14, %c0_15] : memref<8x1xf32, #tpu.memory_space<vmem>>, vector<8x1xf32>
    %29 = arith.mulf %25, %28 : vector<8x1xf32>
    %30 = arith.subf %27, %29 : vector<8x1xf32>
    %c0_16 = arith.constant 0 : index
    %c0_17 = arith.constant 0 : index
    %31 = vector.load %arg7[%c0_16, %c0_17] : memref<8x1xf32, #tpu.memory_space<vmem>>, vector<8x1xf32>
    %32 = arith.cmpf ogt, %19, %31 : vector<8x1xf32>
    %cst_18 = arith.constant 0.000000e+00 : f32
    %33 = vector.broadcast %cst_18 : f32 to vector<8x1xf32>
    %34 = arith.subf %19, %33 : vector<8x1xf32>
    %35 = arith.select %32, %30, %34 : vector<8x1xi1>, vector<8x1xf32>
    %cst_19 = arith.constant 3.200000e+01 : f32
    %36 = vector.broadcast %cst_19 : f32 to vector<8x1xf32>
    %37 = arith.mulf %35, %36 : vector<8x1xf32>
    %38 = vector.shape_cast %37 : vector<8x1xf32> to vector<8x1xf32>
    %39 = vector.broadcast %38 : vector<8x1xf32> to vector<8x128xf32>
    %40 = arith.select %13, %39, %6 : vector<8x128xi1>, vector<8x128xf32>
    %c0_20 = arith.constant 0 : index
    %c0_21 = arith.constant 0 : index
    %41 = vector.load %arg8[%c0_20, %c0_21] : memref<8x128xf32, #tpu.memory_space<vmem>>, vector<8x128xf32>
    tpu.vector_store %arg8[%c0_20, %c0_21], %40 {strides = array<i32>} : memref<8x128xf32, #tpu.memory_space<vmem>>, vector<8x128xf32>,
    return
  }
  func.func @transform_0(%arg0: i32, %arg1: i32) -> (i32, i32) {
    %c0_i32 = arith.constant 0 : i32
    %c0_i32_0 = arith.constant 0 : i32
    return %arg1, %c0_i32 : i32, i32
  }
  func.func @transform_1(%arg0: i32, %arg1: i32) -> (i32, i32) {
    %c0_i32 = arith.constant 0 : i32
    %c0_i32_0 = arith.constant 0 : i32
    return %c0_i32, %arg0 : i32, i32
  }
  func.func @transform_2(%arg0: i32, %arg1: i32) -> (i32, i32) {
    %c0_i32 = arith.constant 0 : i32
    %c0_i32_0 = arith.constant 0 : i32
    return %arg1, %c0_i32 : i32, i32
  }
  func.func @transform_3(%arg0: i32, %arg1: i32) -> (i32, i32) {
    %c0_i32 = arith.constant 0 : i32
    %c0_i32_0 = arith.constant 0 : i32
    return %arg1, %c0_i32 : i32, i32
  }
  func.func @transform_4(%arg0: i32, %arg1: i32) -> (i32, i32) {
    %c0_i32 = arith.constant 0 : i32
    %c0_i32_0 = arith.constant 0 : i32
    return %arg1, %c0_i32 : i32, i32
  }
  func.func @transform_5(%arg0: i32, %arg1: i32) -> (i32, i32) {
    %c0_i32 = arith.constant 0 : i32
    %c0_i32_0 = arith.constant 0 : i32
    return %arg1, %c0_i32 : i32, i32
  }
  func.func @transform_6(%arg0: i32, %arg1: i32) -> (i32, i32) {
    %c0_i32 = arith.constant 0 : i32
    return %arg1, %arg0 : i32, i32
  }
}

</mosaic_0001>

<llo_original>
// kernel: tpu_custom_call.1
$region0: #{tpu_custom_call.1}
  #allocation0 [shape = 'u32[]', space=smem, size = 0x4, offset = 0x4, fixed_abs, tag = 'smem constant byte address 0x4 - core index']
  #allocation1 [shape = 'u32[144,128]{1,0:T(1,128)}', space=vmem, size = 0x12000, scoped, tag = 'internal scratch']
  %s0 = inlined_call_operand.vmem [shape: bf16[8,32], index: 0, kind: input, shape index: {}]
  %s1 = inlined_call_operand.hbm [shape: bf16[32,512], index: 1, kind: input, shape index: {}]
  %s2 = inlined_call_operand.vmem [shape: s32[8,1], index: 2, kind: input, shape index: {}]
  %s3 = inlined_call_operand.vmem [shape: f32[8,1], index: 3, kind: input, shape index: {}]
  %s4 = inlined_call_operand.vmem [shape: f32[8,1], index: 4, kind: input, shape index: {}]
  %s5 = inlined_call_operand.vmem [shape: f32[8,1], index: 5, kind: input, shape index: {}]
  %s6 = inlined_call_operand.hbm [shape: f32[8,512], index: 6, kind: output, shape index: {}]
  %s7 = sld [smem:[#allocation0]]
  $region61: #{tpu_custom_call.1} parent=0
    _
  %s9 = ssub.s32 1, %s7
  %s10 = scalar_select 0, %s9, %s7
  $region1: #{tpu_custom_call.1} parent=0
    #allocation2 [shape = 'u8[16384]{0}', space=vmem, size = 0x4000, scoped, tag = 'input window, operand 1']
    #allocation3 [shape = 's32[2]{0}', space=sflag, size = 0x8, scoped, tag = 'scoped memory for tpu_custom_call.1']
    #allocation4 [shape = 's32[2]{0}', space=sflag, size = 0x8, scoped, tag = 'scoped memory for tpu_custom_call.1']
    #allocation5 [shape = 'u8[8192]{0}', space=vmem, size = 0x2000, scoped, tag = 'output window, operand 0']
    %11 = vsyncpa [#allocation3], 0
    %s12 = scalar_lea.sflag [#allocation3], 1
    %13 = vsyncpa %s12, 0
    %14 = vsyncpa [#allocation4], 0
    %s15 = scalar_lea.sflag [#allocation4], 1
    %16 = vsyncpa %s15, 0
    loop: start=0, step=1, limit=6
    $region2: #{tpu_custom_call.1} parent=1 // loop_pre_header
      _
    $region3: #{tpu_custom_call.1} parent=1 // loop_header
      %s18 = sphi 0, %s22
      %p19 = scmp.ge.s32.totalorder %s18, 6
      %s25 = sphi 0, %s37
      %s26 = sphi 0, %s33
      %s27 = sphi 0, %s25
      %s28 = sphi 0, %s26
      %s29 = sphi 0, %s27
      %s30 = sphi 0, %s28
      %s40 = sphi 0, %s42
      %s43 = sphi 0, %s40
      %s44 = sphi 0, %s43
      %s60 = sphi 0, %s44
      %s66 = sphi 0, %s68
      %s69 = sphi 0, %s66
      %s70 = sphi 0, %s69
      %s86 = sphi 0, %s70
      %s92 = sphi 0, %s94
      %s95 = sphi 0, %s92
      %s96 = sphi 0, %s95
      %s112 = sphi 0, %s96
      %s118 = sphi 0, %s120
      %s121 = sphi 0, %s118
      %s122 = sphi 0, %s121
      %s138 = sphi 0, %s122
      %s144 = sphi 0, %s146
      %s147 = sphi 0, %s144
      %s148 = sphi 0, %s147
      %s164 = sphi 0, %s148
      %s170 = sphi 0, %s172
      %s173 = sphi 0, %s170
      %s174 = sphi 0, %s173
      %s190 = sphi 0, %s174
      %s198 = sphi 0, %s200
      %s201 = sphi 0, %s198
      %s202 = sphi 0, %s201
      %s218 = sphi 0, %s202
    $region4: #{tpu_custom_call.1} parent=1 // loop_header_branch
      %21 = sbr.rel (%p19) target = $region8
    $region5: #{tpu_custom_call.1} parent=1 // loop_body
      %s23 = ssub.s32 %s18, 1
      %s24 = ssub.s32 %s18, 2
      %s31 = sadd.s32 1, %s26
      %p32 = scmp.ge.s32.totalorder %s31, 1
      %s33 = scalar_select %p32, 0, %s31
      %s34 = sadd.s32 1, %s25
      %s35 = scalar_select %p32, %s34, %s25
      %p36 = scmp.ge.s32.totalorder %s35, 4
      %s37 = scalar_select %p36, 0, %s35
      %s38 = ssub.s32 %s26, %s33
      %p39 = scmp.eq.s32.totalorder %s38, 0
      %s41 = sadd.s32 %s40, 1
      %s42 = scalar_select %p39, %s40, %s41
      %p45 = pneg %p39
      %p46 = scmp.eq.s32.totalorder %s18, 3
      %p47 = por %p45, %p46
      %p48 = scmp.ne.s32.totalorder %s40, %s43
      %p49 = scmp.eq.s32.totalorder %s18, 0
      %p50 = por %p48, %p49
      %p51 = scmp.ne.s32.totalorder %s40, %s43
      %p52 = scmp.eq.s32.totalorder %s23, 3
      %p53 = por %p51, %p52
      %p54 = scmp.ne.s32.totalorder %s43, %s44
      %p55 = scmp.eq.s32.totalorder %s23, 0
      %p56 = por %p54, %p55
      %p57 = scmp.ne.s32.totalorder %s43, %s44
      %p58 = scmp.eq.s32.totalorder %s24, 3
      %p59 = por %p57, %p58
      %p61 = scmp.ne.s32.totalorder %s44, %s60
      %p62 = scmp.eq.s32.totalorder %s24, 0
      %p63 = por %p61, %p62
      %s64 = ssub.s32 %s25, %s37
      %p65 = scmp.eq.s32.totalorder %s64, 0
      %s67 = sadd.s32 %s66, 1
      %s68 = scalar_select %p65, %s66, %s67
      %p71 = pneg %p65
      %p72 = scmp.eq.s32.totalorder %s18, 3
      %p73 = por %p71, %p72
      %p74 = scmp.ne.s32.totalorder %s66, %s69
      %p75 = scmp.eq.s32.totalorder %s18, 0
      %p76 = por %p74, %p75
      %p77 = scmp.ne.s32.totalorder %s66, %s69
      %p78 = scmp.eq.s32.totalorder %s23, 3
      %p79 = por %p77, %p78
      %p80 = scmp.ne.s32.totalorder %s69, %s70
      %p81 = scmp.eq.s32.totalorder %s23, 0
      %p82 = por %p80, %p81
      %p83 = scmp.ne.s32.totalorder %s69, %s70
      %p84 = scmp.eq.s32.totalorder %s24, 3
      %p85 = por %p83, %p84
      %p87 = scmp.ne.s32.totalorder %s70, %s86
      %p88 = scmp.eq.s32.totalorder %s24, 0
      %p89 = por %p87, %p88
      %s90 = ssub.s32 %s26, %s33
      %p91 = scmp.eq.s32.totalorder %s90, 0
      %s93 = sadd.s32 %s92, 1
      %s94 = scalar_select %p91, %s92, %s93
      %p97 = pneg %p91
      %p98 = scmp.eq.s32.totalorder %s18, 3
      %p99 = por %p97, %p98
      %p100 = scmp.ne.s32.totalorder %s92, %s95
      %p101 = scmp.eq.s32.totalorder %s18, 0
      %p102 = por %p100, %p101
      %p103 = scmp.ne.s32.totalorder %s92, %s95
      %p104 = scmp.eq.s32.totalorder %s23, 3
      %p105 = por %p103, %p104
      %p106 = scmp.ne.s32.totalorder %s95, %s96
      %p107 = scmp.eq.s32.totalorder %s23, 0
      %p108 = por %p106, %p107
      %p109 = scmp.ne.s32.totalorder %s95, %s96
      %p110 = scmp.eq.s32.totalorder %s24, 3
      %p111 = por %p109, %p110
      %p113 = scmp.ne.s32.totalorder %s96, %s112
      %p114 = scmp.eq.s32.totalorder %s24, 0
      %p115 = por %p113, %p114
      %s116 = ssub.s32 %s26, %s33
      %p117 = scmp.eq.s32.totalorder %s116, 0
      %s119 = sadd.s32 %s118, 1
      %s120 = scalar_select %p117, %s118, %s119
      %p123 = pneg %p117
      %p124 = scmp.eq.s32.totalorder %s18, 3
      %p125 = por %p123, %p124
      %p126 = scmp.ne.s32.totalorder %s118, %s121
      %p127 = scmp.eq.s32.totalorder %s18, 0
      %p128 = por %p126, %p127
      %p129 = scmp.ne.s32.totalorder %s118, %s121
      %p130 = scmp.eq.s32.totalorder %s23, 3
      %p131 = por %p129, %p130
      %p132 = scmp.ne.s32.totalorder %s121, %s122
      %p133 = scmp.eq.s32.totalorder %s23, 0
      %p134 = por %p132, %p133
      %p135 = scmp.ne.s32.totalorder %s121, %s122
      %p136 = scmp.eq.s32.totalorder %s24, 3
      %p137 = por %p135, %p136
      %p139 = scmp.ne.s32.totalorder %s122, %s138
      %p140 = scmp.eq.s32.totalorder %s24, 0
      %p141 = por %p139, %p140
      %s142 = ssub.s32 %s26, %s33
      %p143 = scmp.eq.s32.totalorder %s142, 0
      %s145 = sadd.s32 %s144, 1
      %s146 = scalar_select %p143, %s144, %s145
      %p149 = pneg %p143
      %p150 = scmp.eq.s32.totalorder %s18, 3
      %p151 = por %p149, %p150
      %p152 = scmp.ne.s32.totalorder %s144, %s147
      %p153 = scmp.eq.s32.totalorder %s18, 0
      %p154 = por %p152, %p153
      %p155 = scmp.ne.s32.totalorder %s144, %s147
      %p156 = scmp.eq.s32.totalorder %s23, 3
      %p157 = por %p155, %p156
      %p158 = scmp.ne.s32.totalorder %s147, %s148
      %p159 = scmp.eq.s32.totalorder %s23, 0
      %p160 = por %p158, %p159
      %p161 = scmp.ne.s32.totalorder %s147, %s148
      %p162 = scmp.eq.s32.totalorder %s24, 3
      %p163 = por %p161, %p162
      %p165 = scmp.ne.s32.totalorder %s148, %s164
      %p166 = scmp.eq.s32.totalorder %s24, 0
      %p167 = por %p165, %p166
      %s168 = ssub.s32 %s26, %s33
      %p169 = scmp.eq.s32.totalorder %s168, 0
      %s171 = sadd.s32 %s170, 1
      %s172 = scalar_select %p169, %s170, %s171
      %p175 = pneg %p169
      %p176 = scmp.eq.s32.totalorder %s18, 3
      %p177 = por %p175, %p176
      %p178 = scmp.ne.s32.totalorder %s170, %s173
      %p179 = scmp.eq.s32.totalorder %s18, 0
      %p180 = por %p178, %p179
      %p181 = scmp.ne.s32.totalorder %s170, %s173
      %p182 = scmp.eq.s32.totalorder %s23, 3
      %p183 = por %p181, %p182
      %p184 = scmp.ne.s32.totalorder %s173, %s174
      %p185 = scmp.eq.s32.totalorder %s23, 0
      %p186 = por %p184, %p185
      %p187 = scmp.ne.s32.totalorder %s173, %s174
      %p188 = scmp.eq.s32.totalorder %s24, 3
      %p189 = por %p187, %p188
      %p191 = scmp.ne.s32.totalorder %s174, %s190
      %p192 = scmp.eq.s32.totalorder %s24, 0
      %p193 = por %p191, %p192
      %s194 = ssub.s32 %s26, %s33
      %s195 = ssub.s32 %s25, %s37
      %s196 = sor.u32 %s194, %s195
      %p197 = scmp.eq.s32.totalorder %s196, 0
      %s199 = sadd.s32 %s198, 1
      %s200 = scalar_select %p197, %s198, %s199
      %p203 = pneg %p197
      %p204 = scmp.eq.s32.totalorder %s18, 3
      %p205 = por %p203, %p204
      %p206 = scmp.ne.s32.totalorder %s198, %s201
      %p207 = scmp.eq.s32.totalorder %s18, 0
      %p208 = por %p206, %p207
      %p209 = scmp.ne.s32.totalorder %s198, %s201
      %p210 = scmp.eq.s32.totalorder %s23, 3
      %p211 = por %p209, %p210
      %p212 = scmp.ne.s32.totalorder %s201, %s202
      %p213 = scmp.eq.s32.totalorder %s23, 0
      %p214 = por %p212, %p213
      %p215 = scmp.ne.s32.totalorder %s201, %s202
      %p216 = scmp.eq.s32.totalorder %s24, 3
      %p217 = por %p215, %p216
      %p219 = scmp.ne.s32.totalorder %s202, %s218
      %p220 = scmp.eq.s32.totalorder %s24, 0
      %p221 = por %p219, %p220
      %p222 = scmp.le.s32.totalorder 1, %s18
      %p223 = scmp.lt.s32.totalorder %s18, 5
      %p224 = pnand %p222, %p223
      %p225 = pneg %p224
      // Predicated region
      $region9: #{tpu_custom_call.1} parent=5 // pred_check
        _
      $region10: #{tpu_custom_call.1} parent=5 // pred_check_branch
        %227 = sbr.rel (%p224) target = $region12
      $region11: #{tpu_custom_call.1} parent=5 // pred_region
        %s228 = ssub.s32 %s18, 1
        // Predicated region
        $region13: #{tpu_custom_call.1} parent=11 // pred_check
          %p229 = pneg %p56
        $region14: #{tpu_custom_call.1} parent=11 // pred_check_branch
          %231 = sbr.rel (%p229) target = $region16
        $region15: #{tpu_custom_call.1} parent=11 // pred_region
          %p232 = scmp.lt.s32.totalorder %s28, 0
          %s233 = scalar_select %p232, %s28, 0
          %s234 = smul.addr %s233, 4
          %s235 = scalar_lea.vmem %s0, %s234
        $region16: #{tpu_custom_call.1} parent=11 // pred_fallthru
          _
        // Predicated region
        $region17: #{tpu_custom_call.1} parent=11 // pred_check
          %p236 = pneg %p108
        $region18: #{tpu_custom_call.1} parent=11 // pred_check_branch
          %238 = sbr.rel (%p236) target = $region20
        $region19: #{tpu_custom_call.1} parent=11 // pred_region
          %p239 = scmp.lt.s32.totalorder %s28, 0
          %s240 = scalar_select %p239, %s28, 0
          %s241 = smul.addr %s240, 8
          %s242 = scalar_lea.vmem %s2, %s241
        $region20: #{tpu_custom_call.1} parent=11 // pred_fallthru
          _
        // Predicated region
        $region21: #{tpu_custom_call.1} parent=11 // pred_check
          %p243 = pneg %p134
        $region22: #{tpu_custom_call.1} parent=11 // pred_check_branch
          %245 = sbr.rel (%p243) target = $region24
        $region23: #{tpu_custom_call.1} parent=11 // pred_region
          %p246 = scmp.lt.s32.totalorder %s28, 0
          %s247 = scalar_select %p246, %s28, 0
          %s248 = smul.addr %s247, 8
          %s249 = scalar_lea.vmem %s3, %s248
        $region24: #{tpu_custom_call.1} parent=11 // pred_fallthru
          _
        // Predicated region
        $region25: #{tpu_custom_call.1} parent=11 // pred_check
          %p250 = pneg %p160
        $region26: #{tpu_custom_call.1} parent=11 // pred_check_branch
          %252 = sbr.rel (%p250) target = $region28
        $region27: #{tpu_custom_call.1} parent=11 // pred_region
          %p253 = scmp.lt.s32.totalorder %s28, 0
          %s254 = scalar_select %p253, %s28, 0
          %s255 = smul.addr %s254, 8
          %s256 = scalar_lea.vmem %s4, %s255
        $region28: #{tpu_custom_call.1} parent=11 // pred_fallthru
          _
        // Predicated region
        $region29: #{tpu_custom_call.1} parent=11 // pred_check
          %p257 = pneg %p186
        $region30: #{tpu_custom_call.1} parent=11 // pred_check_branch
          %259 = sbr.rel (%p257) target = $region32
        $region31: #{tpu_custom_call.1} parent=11 // pred_region
          %p260 = scmp.lt.s32.totalorder %s28, 0
          %s261 = scalar_select %p260, %s28, 0
          %s262 = smul.addr %s261, 8
          %s263 = scalar_lea.vmem %s5, %s262
        $region32: #{tpu_custom_call.1} parent=11 // pred_fallthru
          _
      $region12: #{tpu_custom_call.1} parent=5 // pred_fallthru
        _
      %p264 = scmp.lt.s32.totalorder %s18, 4
      // Predicated region
      $region33: #{tpu_custom_call.1} parent=5 // pred_check
        %p265 = pneg %p264
      $region34: #{tpu_custom_call.1} parent=5 // pred_check_branch
        %267 = sbr.rel (%p265) target = $region36
      $region35: #{tpu_custom_call.1} parent=5 // pred_region
        // Predicated region
        $region37: #{tpu_custom_call.1} parent=35 // pred_check
          %p268 = pneg %p76
        $region38: #{tpu_custom_call.1} parent=35 // pred_check_branch
          %270 = sbr.rel (%p268) target = $region40
        $region39: #{tpu_custom_call.1} parent=35 // pred_region
          %s271 = sand.u32 %s66, 1
          %s272 = scalar_lea.sflag [#allocation3], %s271
          %s273 = sand.u32 %s66, 1
          %s274 = smul.addr %s273, 16
          %s275 = scalar_lea.vmem [#allocation2], %s274
          %s277 = ssub.s32 256, 256
          %278 = vsyncadd %s272, %s277
          %s279 = smul.addr %s25, 64
          %s280 = scalar_lea.hbm %s1, %s279
          %s281 = sshll.u32 %s275, 4
          %s282 = int_to_ptr.vmem [resolvable:$true] %s281
          %287 = dma.hbm_to_vmem [thread:$0]  %s280, 256, %s282, %s272, 256, 64, 4
        $region40: #{tpu_custom_call.1} parent=35 // pred_fallthru
          _
      $region36: #{tpu_custom_call.1} parent=5 // pred_fallthru
        _
      %p288 = scmp.le.s32.totalorder 1, %s18
      %p289 = scmp.lt.s32.totalorder %s18, 5
      %p290 = pnand %p288, %p289
      %p291 = pneg %p290
      // Predicated region
      $region41: #{tpu_custom_call.1} parent=5 // pred_check
        _
      $region42: #{tpu_custom_call.1} parent=5 // pred_check_branch
        %293 = sbr.rel (%p290) target = $region44
      $region43: #{tpu_custom_call.1} parent=5 // pred_region
        %s294 = ssub.s32 %s18, 1
        %s295 = sand.u32 %s69, 1
        %s296 = scalar_lea.sflag [#allocation3], %s295
        %s297 = sand.u32 %s69, 1
        %s298 = smul.addr %s297, 16
        %s299 = scalar_lea.vmem [#allocation2], %s298
        // Predicated region
        $region45: #{tpu_custom_call.1} parent=43 // pred_check
          %p300 = pneg %p82
        $region46: #{tpu_custom_call.1} parent=43 // pred_check_branch
          %302 = sbr.rel (%p300) target = $region48
        $region47: #{tpu_custom_call.1} parent=43 // pred_region
          %303 = dma.done %s296, 256
        $region48: #{tpu_custom_call.1} parent=43 // pred_fallthru
          _
        %p304 = scmp.lt.s32.totalorder %s28, 0
        %s305 = scalar_select %p304, %s28, 0
        %s306 = smul.addr %s305, 4
        %s307 = scalar_lea.vmem %s0, %s306
        %p308 = pneg %p56
        %p309 = pneg %p53
        %s310 = sand.u32 %s69, 1
        %s311 = scalar_lea.sflag [#allocation3], %s310
        %s312 = sand.u32 %s69, 1
        %s313 = smul.addr %s312, 16
        %s314 = scalar_lea.vmem [#allocation2], %s313
        %p315 = pneg %p82
        %p316 = pneg %p79
        %p317 = scmp.lt.s32.totalorder %s28, 0
        %s318 = scalar_select %p317, %s28, 0
        %s319 = smul.addr %s318, 8
        %s320 = scalar_lea.vmem %s2, %s319
        %p321 = pneg %p108
        %p322 = pneg %p105
        %p323 = scmp.lt.s32.totalorder %s28, 0
        %s324 = scalar_select %p323, %s28, 0
        %s325 = smul.addr %s324, 8
        %s326 = scalar_lea.vmem %s3, %s325
        %p327 = pneg %p134
        %p328 = pneg %p131
        %p329 = scmp.lt.s32.totalorder %s28, 0
        %s330 = scalar_select %p329, %s28, 0
        %s331 = smul.addr %s330, 8
        %s332 = scalar_lea.vmem %s4, %s331
        %p333 = pneg %p160
        %p334 = pneg %p157
        %p335 = scmp.lt.s32.totalorder %s28, 0
        %s336 = scalar_select %p335, %s28, 0
        %s337 = smul.addr %s336, 8
        %s338 = scalar_lea.vmem %s5, %s337
        %p339 = pneg %p186
        %p340 = pneg %p183
        %p341 = pneg %p214
        %p342 = pneg %p211
        %s343 = sand.u32 %s201, 1
        %s344 = scalar_lea.sflag [#allocation4], %s343
        %s345 = sand.u32 %s201, 1
        %s346 = smul.addr %s345, 8
        %s347 = scalar_lea.vmem [#allocation5], %s346
        %p348 = scmp.lt.s32.totalorder %s28, 0
        %s349 = scalar_select %p348, %s28, 0
        %s350 = smul.addr %s349, 4
        %s351 = scalar_lea.vmem %s0, %s350
        %p352 = scmp.lt.s32.totalorder %s28, 0
        %s353 = scalar_select %p352, %s28, 0
        %s354 = smul.addr %s353, 8
        %s355 = scalar_lea.vmem %s2, %s354
        %p356 = scmp.lt.s32.totalorder %s28, 0
        %s357 = scalar_select %p356, %s28, 0
        %s358 = smul.addr %s357, 8
        %s359 = scalar_lea.vmem %s3, %s358
        %p360 = scmp.lt.s32.totalorder %s28, 0
        %s361 = scalar_select %p360, %s28, 0
        %s362 = smul.addr %s361, 8
        %s363 = scalar_lea.vmem %s4, %s362
        %p364 = scmp.lt.s32.totalorder %s28, 0
        %s365 = scalar_select %p364, %s28, 0
        %s366 = smul.addr %s365, 8
        %s367 = scalar_lea.vmem %s5, %s366
        %v369 = vld [vmem:[%s351] sm:$0xf]
        %v370 = vld [vmem:[%s299] sm:$0xf]
        %v371 = vld [vmem:[%s299 + $0x4] sm:$0xf]
        %v372 = vld [vmem:[%s299 + $0x8] sm:$0xf]
        %v373 = vld [vmem:[%s299 + $0xc] sm:$0xf]
        %v378 = vunpack.c.l.b16 %v370
        %v379 = vunpack.c.l.b16 %v371
        %v380 = vunpack.c.l.b16 %v372
        %v381 = vunpack.c.l.b16 %v373
        %v382 = vpack.c.b16 %v379, %v378
        %v383 = vpack.c.b16 %v381, %v380
        %vm386 = vcmask 261120
        %v388 = vsel %vm386, %v369, 0
        %390 = vmatprep.subr.bf16.mxu0 0
        %391 = vmatpush1.bf16.msra.mxu0 %v382
        %392 = vmatprep.subr.bf16.mxu0 0
        %393 = vmatpush1.bf16.msra.mxu0 %v383
        %394 = vmatprep.subr.bf16.mxu0 0
        %395 = vmatpush1.bf16.msra.mxu0 0
        %396 = vmatprep.subr.bf16.mxu0 0
        %397 = vmatpush1.bf16.msra.mxu0 0
        %398 = vmatprep.subr.bf16.mxu0 0
        %399 = vmatpush1.bf16.msra.mxu0 0
        %400 = vmatprep.subr.bf16.mxu0 0
        %401 = vmatpush1.bf16.msra.mxu0 0
        %402 = vmatprep.subr.bf16.mxu0 0
        %403 = vmatpush1.bf16.msra.mxu0 0
        %404 = vmatprep.subr.bf16.mxu0 0
        %405 = vmatpush1.bf16.msra.mxu0 0
        %406 = vmatprep.subr.bf16.mxu0 0
        %407 = vmatpush1.bf16.msra.mxu0 0
        %408 = vmatprep.subr.bf16.mxu0 0
        %409 = vmatpush1.bf16.msra.mxu0 0
        %410 = vmatprep.subr.bf16.mxu0 0
        %411 = vmatpush1.bf16.msra.mxu0 0
        %412 = vmatprep.subr.bf16.mxu0 0
        %413 = vmatpush1.bf16.msra.mxu0 0
        %414 = vmatprep.subr.bf16.mxu0 0
        %415 = vmatpush1.bf16.msra.mxu0 0
        %416 = vmatprep.subr.bf16.mxu0 0
        %417 = vmatpush1.bf16.msra.mxu0 0
        %418 = vmatprep.subr.bf16.mxu0 0
        %419 = vmatpush1.bf16.msra.mxu0 0
        %420 = vmatprep.subr.bf16.mxu0 0
        %421 = vmatpush1.bf16.msra.mxu0 0
        %422 = vmatprep.mubr.bf16.mxu0 0
        %423 = vmatmul.mubr.bf16.gmra.mrb[0].mxu0 %v388
        %v424 = vpop.f32.mrb[0].mxu0
        %v425 = vadd.f32 0.0, %v424
        %v426 = vpop.f32.mrb[0].mxu0
        %v427 = vpop.f32.mrb[0].mxu0
        %v428 = vpop.f32.mrb[0].mxu0
        %429 = vdwg.mxu0
        %v430 = vmax.f32 %v425, -32.0
        %v431 = vmin.f32 %v430, 32.0
        %v432 = vlaneseq
        %v433 = vand.u32 %v432, 127
        %s434 = smul.u32 %s27, 128
        %v435 = vstv %s434
        %v436 = vadd.s32 %v433, %v435
        %v437 = vld [vmem:[%s355] sm:$0xff]
        %438 = vset.pattern.permute.xlu0 0
        %439 = vperm.xlu0 %438, %v437
        %v440 = vpop.permute.xlu0 %439
        %vm441 = vcmp.eq.s32.totalorder %v436, %v440
        %v442 = vsel %vm441, %v431, 0.0
        %443 = vadd.xlane.f32.xlu0 %v442
        %v444 = vpop.xlane.xlu0 %443
        %v445 = vmul.f32 %v444, 0.03125
        %v446 = vmul.f32 %v445, %v445
        %v447 = vsub.f32 1.0, %v446
        %v448 = vmax.f32 %v447, 0.0
        %v449 = vrsqrt.pop %v448
        %v450 = vmul.f32 %v448, %v449
        %vm451 = vcmp.eq.f32.partialorder %v448, inf
        %v452 = vsel %vm451, %v448, %v450
        %vm453 = vcmp.eq.f32.partialorder %v448, 0.0
        %v454 = vand.u32 %v448, 2147483648
        %v455 = vsel %vm453, %v454, %v452
        %v456 = vld [vmem:[%s359] sm:$0xff]
        %v457 = vmul.f32 %v445, %v456
        %v458 = vld [vmem:[%s363] sm:$0xff]
        %v459 = vmul.f32 %v455, %v458
        %v460 = vsub.f32 %v457, %v459
        %v461 = vld [vmem:[%s367] sm:$0xff]
        %vm462 = vcmp.gt.f32.partialorder %v445, %v461
        %v463 = vsel %vm462, %v460, %v445
        %v464 = vmul.f32 %v463, 32.0
        %466 = vset.pattern.permute.xlu0 0
        %467 = vperm.xlu0 %466, %v464
        %v468 = vpop.permute.xlu0 %467
        %v470 = vsel %vm441, %v468, %v431
        %471 = vst [vmem:[%s347] sm:$0xff] %v470
        %s472 = sand.u32 %s201, 1
        %s473 = scalar_lea.sflag [#allocation4], %s472
        %s474 = sand.u32 %s201, 1
        %s475 = smul.addr %s474, 8
        %s476 = scalar_lea.vmem [#allocation5], %s475
        // Predicated region
        $region49: #{tpu_custom_call.1} parent=43 // pred_check
          %p477 = pneg %p211
        $region50: #{tpu_custom_call.1} parent=43 // pred_check_branch
          %479 = sbr.rel (%p477) target = $region52
        $region51: #{tpu_custom_call.1} parent=43 // pred_region
          %s481 = ssub.s32 128, 128
          %482 = vsyncadd %s473, %s481
          %s483 = smul.addr %s28, 4
          %s484 = sadd.s32 %s27, %s483
          %s485 = smul.addr %s484, 128
          %s486 = scalar_lea.hbm %s6, %s485
          %s488 = sshll.u32 %s476, 4
          %s489 = int_to_ptr.vmem [resolvable:$true] %s488
          %491 = dma.vmem_to_hbm [thread:$0]  %s489, 128, %s486, %s473
        $region52: #{tpu_custom_call.1} parent=43 // pred_fallthru
          _
      $region44: #{tpu_custom_call.1} parent=5 // pred_fallthru
        _
      %p492 = scmp.le.s32.totalorder 2, %s18
      // Predicated region
      $region53: #{tpu_custom_call.1} parent=5 // pred_check
        %p493 = pneg %p492
      $region54: #{tpu_custom_call.1} parent=5 // pred_check_branch
        %495 = sbr.rel (%p493) target = $region56
      $region55: #{tpu_custom_call.1} parent=5 // pred_region
        %s496 = ssub.s32 %s18, 2
        // Predicated region
        $region57: #{tpu_custom_call.1} parent=55 // pred_check
          %p497 = pneg %p217
        $region58: #{tpu_custom_call.1} parent=55 // pred_check_branch
          %499 = sbr.rel (%p497) target = $region60
        $region59: #{tpu_custom_call.1} parent=55 // pred_region
          %s500 = sand.u32 %s202, 1
          %s501 = scalar_lea.sflag [#allocation4], %s500
          %s502 = sand.u32 %s202, 1
          %s503 = smul.addr %s502, 8
          %s504 = scalar_lea.vmem [#allocation5], %s503
          %505 = dma.done %s501, 128
        $region60: #{tpu_custom_call.1} parent=55 // pred_fallthru
          _
      $region56: #{tpu_custom_call.1} parent=5 // pred_fallthru
        _
    $region6: #{tpu_custom_call.1} parent=1 // loop_footer
      %s22 = sadd.s32 1, %s18
    $region7: #{tpu_custom_call.1} parent=1 // loop_footer_branch
      %17 = sbr.rel target = $region3
    $region8: #{tpu_custom_call.1} parent=1 // loop_exit
      _
    %506 = vsyncpa [#allocation3], 1
    %s507 = scalar_lea.sflag [#allocation3], 1
    %508 = vsyncpa %s507, 1
    %509 = vsyncpa [#allocation4], 1
    %s510 = scalar_lea.sflag [#allocation4], 1
    %511 = vsyncpa %s510, 1

</llo_original>
